<compile_context>
chip_gen: v7x
topology: tpu7x:2x2x1
jax: 0.10.0
libtpu: 0.0.40
codegen_flags: <defaults>
</compile_context>

<pallas_src>
import jax
import jax.numpy as jnp
from jax import lax
from jax.experimental import pallas as pl
from jax.experimental.pallas import tpu as pltpu

_LANES = 128
_SUBLANES = 8
_CHUNK_ROWS = 64       # rows per inner fori_loop step (8 f32 vregs per operand)
_SMALL_ROWS = 64       # <= this many 128-lane rows -> single-block kernel


def _round_up(x: int, m: int) -> int:
    return ((x + m - 1) // m) * m


def _cdiv(a: int, b: int) -> int:
    return (a + b - 1) // b


def _default_num_partials() -> int:
    """2 grid shards on chips with 2 TensorCores (v4 / v5p / v7x), else 1."""
    try:
        kind = jax.devices()[0].device_kind.lower()
    except Exception:
        return 1
    if "v4" in kind or "v5p" in kind or "7" in kind:
        return 2
    return 1


# ----------------------------------------------------------------------------
# Kernel 1: mse_loss -> mean(0.5 * |y - pred|^2)
# ----------------------------------------------------------------------------
def _mse_small_kernel_factory(scale):
    """Whole-array (<= 64 rows x 128 lanes) kernel: one scalar SMEM output."""
    def kernel(pred_ref, y_ref, out_ref):
        d = y_ref[...].astype(jnp.float32) - pred_ref[...].astype(jnp.float32)
        out_ref[0] = jnp.sum(d * d) * scale
    return kernel


def _mse_tiled_kernel_factory(tb, steps, rows_total, scale):
    """Tiled streaming reduction: grid = (shards, steps), tile = (tb, 128)."""
    nchunks = tb // _CHUNK_ROWS

    def kernel(pred_ref, y_ref, out_ref, acc_ref):
        c = pl.program_id(0)
        s = pl.program_id(1)

        @pl.when(s == 0)
        def _init():
            acc_ref[...] = jnp.zeros_like(acc_ref)

        # Nominal first slab-row of this grid step.  For "duplicate" steps whose
        # block index was clamped in the index_map (shard count does not divide
        # the block count) row0 >= rows_total and the ragged branch masks the
        # whole contribution to zero.
        row0 = (c * steps + s) * tb

        def _chunk(i, ragged):
            r = pl.multiple_of(i * _CHUNK_ROWS, _CHUNK_ROWS)
            d = (y_ref[pl.ds(r, _CHUNK_ROWS), :].astype(jnp.float32)
                 - pred_ref[pl.ds(r, _CHUNK_ROWS), :].astype(jnp.float32))
            sq = d * d
            if ragged:
                rr = lax.broadcasted_iota(jnp.int32, (_CHUNK_ROWS, _LANES), 0)
                sq = jnp.where(row0 + r + rr < rows_total, sq, 0.0)
            # (64,128) -> (8,8,128) regroup + sum over the major axis: pure
            # elementwise vreg adds into an (8,128) running partial.
            return sq.reshape(_CHUNK_ROWS // _SUBLANES, _SUBLANES, _LANES).sum(axis=0)

        @pl.when(row0 + tb <= rows_total)     # fully in-bounds tile: no masking
        def _full():
            acc_ref[...] += lax.fori_loop(
                0, nchunks, lambda i, acc: acc + _chunk(i, False),
                jnp.zeros((_SUBLANES, _LANES), jnp.float32), unroll=4)

        @pl.when(row0 + tb > rows_total)      # trailing / duplicate tile: masked
        def _ragged():
            acc_ref[...] += lax.fori_loop(
                0, nchunks, lambda i, acc: acc + _chunk(i, True),
                jnp.zeros((_SUBLANES, _LANES), jnp.float32), unroll=4)

        @pl.when(s == steps - 1)
        def _finalize():
            # One cross-lane reduce per shard (idle XLU slot) -> scalar in SMEM.
            out_ref[0] = jnp.sum(acc_ref[...]) * scale

    return kernel


def mse_loss(predicted_y: jax.Array, y: jax.Array, *,
             tile_rows: int = 1024, num_partials: int | None = None) -> jax.Array:
    predicted_y = jnp.asarray(predicted_y)
    y = jnp.asarray(y)
    assert predicted_y.shape == y.shape
    n = int(predicted_y.size)
    if n == 0:
        return jnp.zeros((), jnp.float32)
    scale = 0.5 / n                         # fold the 0.5 and the mean divisor

    def to_rows(x):
        # Zero-copy fast path: lane-aligned element count -> metadata reshape
        # only, NATIVE dtype (no upcast, no pad copy).
        if n % _LANES == 0:
            return x.reshape(n // _LANES, _LANES)
        # Rare ragged-N fallback: zero tail-pad BOTH inputs (diff == 0 there).
        flat = x.reshape(-1)
        flat = jnp.pad(flat, (0, _round_up(n, _LANES) - n))
        return flat.reshape(-1, _LANES)

    pred2d = to_rows(predicted_y)
    y2d = to_rows(y)
    rows = pred2d.shape[0]

    if rows <= _SMALL_ROWS:
        # Tiny input: single whole-array block (launch-overhead bound anyway).
        out = pl.pallas_call(
            _mse_small_kernel_factory(scale),
            out_shape=jax.ShapeDtypeStruct((1,), jnp.float32),
            in_specs=[pl.BlockSpec(memory_space=pltpu.MemorySpace.VMEM)] * 2,
            out_specs=pl.BlockSpec(memory_space=pltpu.MemorySpace.SMEM),
        )(pred2d, y2d)
        return out[0]

    # tb: multiple of the chunk size, <= rows, default 1024 rows (~512 KiB f32
    # tile; 2 inputs x 2 buffers ~= 2 MiB VMEM -> safe on every generation).
    tb = min(_round_up(max(tile_rows, _CHUNK_ROWS), _CHUNK_ROWS),
             (rows // _CHUNK_ROWS) * _CHUNK_ROWS)
    total_blocks = _cdiv(rows, tb)
    p = _default_num_partials() if num_partials is None else int(num_partials)
    if total_blocks < 4 * p:        # keep >= 4 pipelined steps per shard
        p = 1
    steps = _cdiv(total_blocks, p)

    def idx(c, s):
        # Clamp so duplicate trailing steps stay in-range; their data is
        # masked to zero inside the kernel via the nominal row offset.
        return (jnp.minimum(c * steps + s, total_blocks - 1), 0)

    out = pl.pallas_call(
        _mse_tiled_kernel_factory(tb, steps, rows, scale),
        out_shape=jax.ShapeDtypeStruct((p,), jnp.float32),
        grid=(p, steps),
        in_specs=[pl.BlockSpec((tb, _LANES), idx),
                  pl.BlockSpec((tb, _LANES), idx)],
        out_specs=pl.BlockSpec((1,), lambda c, s: (c,),
                               memory_space=pltpu.MemorySpace.SMEM),
        scratch_shapes=[pltpu.VMEM((_SUBLANES, _LANES), jnp.float32)],
        compiler_params=pltpu.CompilerParams(
            dimension_semantics=("parallel", "arbitrary")),
    )(pred2d, y2d)
    return jnp.sum(out) if p > 1 else out[0]


# ----------------------------------------------------------------------------
# Kernel 2: encode_action -> one-hot of shape [B, num_actions]
#   (equivalent to torch.zeros(B, A).scatter_(1, a, ones))
#   NOTE: negative / out-of-range indices produce an all-zero row (torch
#   scatter_ would raise).
# ----------------------------------------------------------------------------
def _encode_action_kernel(a_ref, out_ref):
    tb, na = out_ref.shape
    cols = lax.broadcasted_iota(jnp.int32, (tb, na), 1)
    # One broadcast compare against the (tb, 1) action column: no per-row
    # scalar loop, no SMEM residency limit, scales to any row-block size.
    out_ref[...] = (cols == a_ref[...]).astype(out_ref.dtype)


def encode_action(a: jax.Array, num_actions: int, *, block_rows: int = 512) -> jax.Array:
    a = jnp.asarray(a)
    b = int(a.shape[0])
    a2d = a.reshape(b, -1)[:, :1].astype(jnp.int32)       # (b, 1) indices

    if b <= block_rows:
        tb = b                                            # full-dim block
    else:
        tb = _round_up(block_rows, _SUBLANES)             # 512-row blocks
    grid = (_cdiv(b, tb),)

    # The one-hot is written directly at its exact (B, num_actions) shape:
    # no padded 128-lane slab + wrapper slice (which cost an extra HBM pass).
    # TODO(synk): in a subclass forward(), fuse one_hot(a) @ W as a row gather
    # of W (scalar-prefetch indexed BlockSpec) instead of materializing this.
    return pl.pallas_call(
        _encode_action_kernel,
        out_shape=jax.ShapeDtypeStruct((b, num_actions), jnp.float32),
        grid=grid,
        in_specs=[pl.BlockSpec((tb, 1), lambda i: (i, 0))],
        out_specs=pl.BlockSpec((tb, num_actions), lambda i: (i, 0)),
        compiler_params=pltpu.CompilerParams(dimension_semantics=("parallel",)),
    )(a2d)


# ----------------------------------------------------------------------------
# JAX-side "Network" mirroring the PyTorch base class.
# ----------------------------------------------------------------------------
class Network:
    def __init__(self, **kwargs):
        self.lr = kwargs["lr"]
        self.state_dim = kwargs["state_dim"]
        self.num_actions = kwargs["num_actions"]
        # The torch base class defines no parameters (w_enc / w_a / w_dec
        # belong to subclasses), so there is nothing to initialize here.

    # --- abstract in the PyTorch source ------------------------------------
    def forward(self, x, a):
        # TODO(synk): abstract in the source; subclasses define the actual
        # architecture (and that is where the one-hot should be fused).
        raise NotImplementedError

    def fit(self, x, a, y):
        raise NotImplementedError

    def evaluate(self, x, a, y):
        raise NotImplementedError

    def predict_mean(self, x, a):
        raise NotImplementedError

    def predict_aleatoric_variance(self, x, a):
        raise NotImplementedError

    # --- concrete numerics (Pallas) -----------------------------------------
    def mse_loss(self, predicted_y, y):
        return mse_loss(predicted_y, y)

    def encode_action(self, a):
        return encode_action(a, self.num_actions)

    def encode_state(self, s):
        return jnp.asarray(s, dtype=jnp.float32)[None, ...]

    # TODO(synk): init_weight / save_checkpoint / resume_checkpoint /
    # copy_checkpoint / write_summary are host-side parameter & file I/O with
    # no Pallas equivalent.


if __name__ == "__main__":
    B, STATE_DIM, NUM_ACTIONS = 8, 32, 4
    net = Network(lr=1e-3, state_dim=STATE_DIM, num_actions=NUM_ACTIONS)

    key = jax.random.PRNGKey(0)
    ks = jax.random.split(key, 8)
    pred = jax.random.normal(ks[0], (B, STATE_DIM), dtype=jnp.float32)
    y = jax.random.normal(ks[1], (B, STATE_DIM), dtype=jnp.float32)
    a = jax.random.randint(ks[2], (B, 1), 0, NUM_ACTIONS, dtype=jnp.int32)

    loss = net.mse_loss(pred, y)          # small path (rows=2), zero copies
    onehot = net.encode_action(a)         # direct (B, num_actions) one-hot

    # Tiled path with a ragged trailing tile (rows=900, tb=896).
    pred2 = jax.random.normal(ks[3], (300, 384), dtype=jnp.float32)
    y2 = jax.random.normal(ks[4], (300, 384), dtype=jnp.float32)
    loss2 = mse_loss(pred2, y2)

    # Tiled path, forced 2-way parallel shards + clamped duplicate tile
    # (17 tiles split 9/8 between the two shards).
    pred3 = jax.random.normal(ks[5], (2176, 128), dtype=jnp.float32)
    y3 = jax.random.normal(ks[6], (2176, 128), dtype=jnp.float32)
    loss3 = mse_loss(pred3, y3, tile_rows=128, num_partials=2)

    # Native bf16 streaming (upcast happens per-chunk inside the kernel).
    loss4 = mse_loss(pred3.astype(jnp.bfloat16), y3.astype(jnp.bfloat16),
                     tile_rows=128)

    # Ragged element count (N % 128 != 0) -> wrapper tail-pad fallback.
    pred5 = jax.random.normal(ks[7], (7, 30), dtype=jnp.float32)
    y5 = 0.5 * pred5
    loss5 = mse_loss(pred5, y5)

    jax.block_until_ready((loss, onehot, loss2, loss3, loss4, loss5))

    # reference checks (plain JAX)
    def ref_mse(p_, y_):
        pf, yf = p_.astype(jnp.float32), y_.astype(jnp.float32)
        return jnp.mean(0.5 * jnp.abs(yf - pf) ** 2)

    assert jnp.allclose(loss, ref_mse(pred, y), rtol=1e-5, atol=1e-6)
    assert jnp.allclose(loss2, ref_mse(pred2, y2), rtol=1e-5, atol=1e-6)
    assert jnp.allclose(loss3, ref_mse(pred3, y3), rtol=1e-5, atol=1e-6)
    assert jnp.allclose(loss4, ref_mse(pred3.astype(jnp.bfloat16),
                                       y3.astype(jnp.bfloat16)),
                        rtol=1e-3, atol=1e-5)
    assert jnp.allclose(loss5, ref_mse(pred5, y5), rtol=1e-5, atol=1e-6)
    assert jnp.array_equal(
        onehot, jax.nn.one_hot(a[:, 0], NUM_ACTIONS, dtype=jnp.float32))

    print("KERNEL_OK")
</pallas_src>

<mosaic_0001>
module attributes {stable_mosaic.version = 11 : i64} {
  func.func @kernel(%arg0: memref<2x128xf32, #tpu.memory_space<vmem>>, %arg1: memref<2x128xf32, #tpu.memory_space<vmem>>, %arg2: memref<1xf32, #tpu.memory_space<smem>>) attributes {dimension_semantics = [], scalar_prefetch = 0 : i64, scratch_operands = 0 : i64, tpu.core_type = #tpu.core_type<tc>} {
    %c0 = arith.constant 0 : index
    %c0_0 = arith.constant 0 : index
    %0 = vector.load %arg1[%c0, %c0_0] : memref<2x128xf32, #tpu.memory_space<vmem>>, vector<2x128xf32>
    %c0_1 = arith.constant 0 : index
    %c0_2 = arith.constant 0 : index
    %1 = vector.load %arg0[%c0_1, %c0_2] : memref<2x128xf32, #tpu.memory_space<vmem>>, vector<2x128xf32>
    %2 = arith.subf %0, %1 : vector<2x128xf32>
    %3 = arith.mulf %2, %2 : vector<2x128xf32>
    %4 = vector.shape_cast %3 : vector<2x128xf32> to vector<1x2x128xf32>
    %cst = arith.constant dense<0.000000e+00> : vector<1xf32>
    %5 = vector.multi_reduction <add>, %4, %cst [1, 2] : vector<1x2x128xf32> to vector<1xf32>
    %6 = vector.shape_cast %5 : vector<1xf32> to vector<1x1x1xf32>
    %7 = vector.extract %6[0, 0, 0] : f32 from vector<1x1x1xf32>
    %cst_3 = arith.constant 0.001953125 : f32
    %8 = arith.mulf %7, %cst_3 : f32
    %c0_4 = arith.constant 0 : index
    %9 = memref.load %arg2[%c0_4] : memref<1xf32, #tpu.memory_space<smem>>
    memref.store %8, %arg2[%c0_4] : memref<1xf32, #tpu.memory_space<smem>>
    return
  }
}

</mosaic_0001>

<llo_original>
// kernel: tpu_custom_call.1
$region0: #{tpu_custom_call.1}
  #allocation0 [shape = 'u32[]', space=smem, size = 0x4, offset = 0x4, fixed_abs, tag = 'smem constant byte address 0x4 - core index']
  #allocation1 [shape = 'u32[144,128]{1,0:T(1,128)}', space=vmem, size = 0x12000, scoped, tag = 'internal scratch']
  %s0 = inlined_call_operand.hbm [shape: f32[2,128], index: 0, kind: input, shape index: {}]
  %s1 = inlined_call_operand.vmem [shape: f32[2,128], index: 1, kind: input, shape index: {}]
  %s2 = inlined_call_operand.hbm [shape: f32[1], index: 2, kind: output, shape index: {}]
  %s3 = sld [smem:[#allocation0]]
  $region22: #{tpu_custom_call.1} parent=0
    _
  %s5 = ssub.s32 1, %s3
  %s6 = scalar_select 0, %s5, %s3
  $region1: #{tpu_custom_call.1} parent=0
    #allocation2 [shape = 'u8[1024]{0}', space=vmem, size = 0x400, scoped, tag = 'input window, operand 0, single buffered']
    #allocation3 [shape = 's32[1]{0}', space=sflag, size = 0x4, scoped, tag = 'scoped memory for tpu_custom_call.1']
    #allocation4 [shape = 's32[1]{0}', space=sflag, size = 0x4, scoped, tag = 'scoped memory for tpu_custom_call.1']
    #allocation5 [shape = 'u8[512]{0}', space=smem, size = 0x200, scoped, tag = 'output window, operand 0, single buffered']
    %7 = vsyncpa [#allocation3], 0
    %8 = vsyncpa [#allocation4], 0
    // Predicated region
    $region2: #{tpu_custom_call.1} parent=1 // pred_check
      _
    $region3: #{tpu_custom_call.1} parent=1 // pred_check_branch
      %10 = sbr.rel (0) target = $region5
    $region4: #{tpu_custom_call.1} parent=1 // pred_region
      %s12 = ssub.s32 32, 32
      %13 = vsyncadd [#allocation3], %s12
      %s15 = sshll.u32 [#allocation2], 4
      %s16 = int_to_ptr.vmem [resolvable:$true] %s15
      %18 = dma.hbm_to_vmem [thread:$0]  %s0, 32, %s16, [#allocation3]
    $region5: #{tpu_custom_call.1} parent=1 // pred_fallthru
      _
    // Predicated region
    $region6: #{tpu_custom_call.1} parent=1 // pred_check
      _
    $region7: #{tpu_custom_call.1} parent=1 // pred_check_branch
      %20 = sbr.rel (0) target = $region9
    $region8: #{tpu_custom_call.1} parent=1 // pred_region
      _
    $region9: #{tpu_custom_call.1} parent=1 // pred_fallthru
      _
    // Predicated region
    $region10: #{tpu_custom_call.1} parent=1 // pred_check
      _
    $region11: #{tpu_custom_call.1} parent=1 // pred_check_branch
      %22 = sbr.rel (0) target = $region13
    $region12: #{tpu_custom_call.1} parent=1 // pred_region
      %23 = dma.done [#allocation3], 32
    $region13: #{tpu_custom_call.1} parent=1 // pred_fallthru
      _
    %v24 = vld [vmem:[%s1] sm:$0x3]
    %v25 = vld [vmem:[#allocation2] sm:$0x3]
    %v26 = vsub.f32 %v24, %v25
    %v27 = vmul.f32 %v26, %v26
    %vm28 = vcmask 1041408
    %v29 = vsel %vm28, %v27, 0.0
    %30 = vadd.xlane.f32.xlu0 %v29
    %v31 = vpop.xlane.xlu0 %30
    %v32 = vrot.slane %v31, 4
    %v33 = vadd.f32 %v31, %v32
    %v34 = vrot.slane %v33, 2
    %v35 = vadd.f32 %v33, %v34
    %v36 = vrot.slane %v35, 1
    %v37 = vadd.f32 %v35, %v36
    %s38 = vtos %v37
    %s39 = smul.f32 %s38, 0.001953125
    %s40 = scalar_lea.smem [#allocation5], 0
    %41 = sst [smem:[%s40]] %s39
    // Predicated region
    $region14: #{tpu_custom_call.1} parent=1 // pred_check
      _
    $region15: #{tpu_custom_call.1} parent=1 // pred_check_branch
      %43 = sbr.rel (0) target = $region17
    $region16: #{tpu_custom_call.1} parent=1 // pred_region
      %s45 = ssub.s32 16, 16
      %46 = vsyncadd [#allocation4], %s45
      %49 = dma.smem_to_hbm [#allocation5], 16, %s2, [#allocation4]
    $region17: #{tpu_custom_call.1} parent=1 // pred_fallthru
      _
    // Predicated region
    $region18: #{tpu_custom_call.1} parent=1 // pred_check
      _
    $region19: #{tpu_custom_call.1} parent=1 // pred_check_branch
      %51 = sbr.rel (0) target = $region21
    $region20: #{tpu_custom_call.1} parent=1 // pred_region
      %52 = dma.done [#allocation4], 16
    $region21: #{tpu_custom_call.1} parent=1 // pred_fallthru
      _
    %53 = sfence
    %54 = vsyncpa [#allocation3], 1
    %55 = vsyncpa [#allocation4], 1

</llo_original>
